<compile_context>
chip_gen: v7x
topology: tpu7x:2x2x1
jax: 0.10.0
libtpu: 0.0.40
codegen_flags: <defaults>
</compile_context>

<pallas_src>
import functools

import jax
import jax.numpy as jnp
from jax.experimental import pallas as pl
from jax.experimental.pallas import tpu as pltpu


def _round_up(n, k):
    return ((n + k - 1) // k) * k


def _amsoftmax_kernel(xs_ref, ws_ref, cbias_ref, lab_ref,
                      logits_ref, loss_ref,
                      l_scr, tgt_scr,
                      *, sm, s, n_passes, needs_mask):
    j = pl.program_id(1)
    nj = pl.num_programs(1)

    # Reset the streaming-softmax state once per batch tile (class axis is the
    # inner "arbitrary" grid axis).
    @pl.when(j == 0)
    def _():
        l_scr[...] = jnp.zeros_like(l_scr)
        tgt_scr[...] = jnp.zeros_like(tgt_scr)

    # Inputs are pre-normalized (and x pre-scaled by s) in the wrapper, so the
    # MXU output is already s * costh.  bf16 operands, f32 accumulation.
    x_hi = xs_ref[0]                      # (TB, D)  bf16
    w_hi = ws_ref[0]                      # (D, TC)  bf16
    raw = jnp.dot(x_hi, w_hi, preferred_element_type=jnp.float32)
    if n_passes == 2:
        # hi/lo split: drop only the lo*lo term (~2^-18 relative) -> ~f32 parity
        # at 3 bf16 MXU passes instead of a native f32 matmul.
        x_lo = xs_ref[1]
        w_lo = ws_ref[1]
        raw = raw + (jnp.dot(x_hi, w_lo, preferred_element_type=jnp.float32)
                     + jnp.dot(x_lo, w_hi, preferred_element_type=jnp.float32))

    _, blk_c = logits_ref.shape
    # (1, TC) lane iota; broadcasting against (TB, 1) labels builds the one-hot.
    col = jax.lax.broadcasted_iota(jnp.int32, (1, blk_c), 1) + j * blk_c
    onehot = (col == lab_ref[...]).astype(jnp.float32)            # (TB, TC)

    # logits = s*costh - s*m*onehot  (margin as multiply+sub, no select).
    logits = raw - jnp.float32(sm) * onehot
    if needs_mask:
        # Precomputed per-column bias: 0 for valid classes, -1e30 for padding,
        # so padded columns vanish from the logsumexp (exp underflows to 0).
        logits = logits + cbias_ref[...]
    logits_ref[...] = logits

    # Fixed-shift streaming logsumexp: costh <= 1  =>  logits <= s, so shifting by
    # the constant s is overflow-safe and needs no running max.
    l_scr[...] = l_scr[...] + jnp.sum(jnp.exp(logits - jnp.float32(s)),
                                      axis=1, keepdims=True)
    # Target logit accumulator (picked up in whichever class tile holds the label).
    tgt_scr[...] = tgt_scr[...] + jnp.sum(logits * onehot, axis=1, keepdims=True)

    @pl.when(j == nj - 1)
    def _():
        # per-row CE = logsumexp(logits) - logits[label]
        loss_ref[...] = jnp.float32(s) + jnp.log(l_scr[...]) - tgt_scr[...]


def amsoftmax_forward(x, W, label, m=0.35, s=30.0, tb=None, tc=None,
                      precision="highest"):
    """Returns (loss, costh_m_s) exactly like AMSoftmax.forward.

    precision="highest": hi/lo bf16 split (2 operand passes, ~f32 accuracy).
    precision="bf16":    single bf16 pass (fastest, ~1e-3 relative costh error).
    """
    B, D = x.shape
    Dw, C = W.shape
    assert D == Dw
    P = 2 if precision == "highest" else 1

    # --- f32 normalization in the wrapper (tiny O(B*D + D*C) elementwise work) ---
    # Matches torch: x / clamp(||x||, 1e-12), W / clamp(||w_c||, 1e-12).  The s
    # scale is folded into x so the kernel's matmul is already s * costh.
    xf = x.astype(jnp.float32)
    Wf = W.astype(jnp.float32)
    x_n = xf * jax.lax.rsqrt(
        jnp.maximum(jnp.sum(xf * xf, axis=1, keepdims=True), jnp.float32(1e-24)))
    w_n = Wf * jax.lax.rsqrt(
        jnp.maximum(jnp.sum(Wf * Wf, axis=0, keepdims=True), jnp.float32(1e-24)))
    x_s = jnp.float32(s) * x_n

    # --- generation-aware VMEM budget ---
    try:
        vmem_cap = int(pltpu.get_tpu_info().vmem_capacity_bytes)
    except Exception:
        vmem_cap = 128 * 1024 * 1024
    vmem_budget = min(int(0.80 * vmem_cap), 100 * 1024 * 1024)

    # --- tile selection: sublane-aligned batch tiles, lane-dense class tiles ---
    B8 = _round_up(B, 8)
    C128 = _round_up(C, 128)
    TB = _round_up(min(int(tb) if tb is not None else 256, B8), 8)
    TC = _round_up(min(int(tc) if tc is not None else 1024, C128), 128)

    def working_set(tb_, tc_):
        # Double-buffered bf16 x/W tiles + f32 logits tiles + small slack.
        return (4 * P * tb_ * D + 4 * P * D * tc_ + 8 * tb_ * tc_ + (64 << 10))

    while working_set(TB, TC) > vmem_budget and TC > 128:
        TC = _round_up(TC // 2, 128)
    while working_set(TB, TC) > vmem_budget and TB > 8:
        TB = _round_up(TB // 2, 8)

    B_pad = _round_up(B, TB)
    C_pad = _round_up(C, TC)

    # Megacore: on 64-MiB-VMEM parts (v7x, 2 TensorCores sharing the "parallel"
    # batch axis) make sure there are >= 2 batch tiles when the batch allows it.
    if tb is None and vmem_cap <= 64 * 1024 * 1024 and B_pad // TB == 1 and B >= 16:
        TB = _round_up((B + 1) // 2, 8)
        B_pad = _round_up(B, TB)

    ni = B_pad // TB
    nj = C_pad // TC
    needs_mask = (C_pad != C)

    # --- pack bf16 MXU operands (padded; hi/lo stacked on a leading axis) ---
    def pack(a, pad_rows, pad_cols):
        a = jnp.pad(a, ((0, pad_rows), (0, pad_cols)))
        if P == 2:
            hi = a.astype(jnp.bfloat16)
            lo = (a - hi.astype(jnp.float32)).astype(jnp.bfloat16)
            return jnp.stack([hi, lo], axis=0)
        return a.astype(jnp.bfloat16)[None]

    xs = pack(x_s, B_pad - B, 0)                         # (P, B_pad, D) bf16
    ws = pack(w_n, 0, C_pad - C)                         # (P, D, C_pad) bf16
    lab = jnp.pad(label.astype(jnp.int32).reshape(-1),
                  (0, B_pad - B)).reshape(B_pad, 1)      # (B_pad, 1)   int32
    col_ids = jnp.arange(C_pad, dtype=jnp.int32)[None, :]
    cbias = jnp.where(col_ids < C, jnp.float32(0.0),
                      jnp.float32(-1e30))                # (1, C_pad)   f32

    vmem_limit = int(min(max(2 * working_set(TB, TC), 32 * 1024 * 1024),
                         vmem_budget))

    kernel = functools.partial(_amsoftmax_kernel,
                               sm=float(s) * float(m), s=float(s),
                               n_passes=P, needs_mask=needs_mask)

    logits, per_row = pl.pallas_call(
        kernel,
        out_shape=(
            jax.ShapeDtypeStruct((B_pad, C_pad), jnp.float32),
            jax.ShapeDtypeStruct((B_pad, 1), jnp.float32),
        ),
        grid=(ni, nj),
        in_specs=[
            pl.BlockSpec((P, TB, D), lambda i, j: (0, i, 0)),   # x (hi/lo) tile
            pl.BlockSpec((P, D, TC), lambda i, j: (0, 0, j)),   # W (hi/lo) tile
            pl.BlockSpec((1, TC), lambda i, j: (0, j)),         # column pad bias
            pl.BlockSpec((TB, 1), lambda i, j: (i, 0)),         # labels (resident over j)
        ],
        out_specs=(
            pl.BlockSpec((TB, TC), lambda i, j: (i, j)),        # lane-dense logits slab
            pl.BlockSpec((TB, 1), lambda i, j: (i, 0)),         # per-row loss (last j)
        ),
        scratch_shapes=[
            pltpu.VMEM((TB, 1), jnp.float32),  # running sum of exp(logits - s)
            pltpu.VMEM((TB, 1), jnp.float32),  # target-logit accumulator
        ],
        compiler_params=pltpu.CompilerParams(
            dimension_semantics=("parallel", "arbitrary"),
            vmem_limit_bytes=vmem_limit,
        ),
    )(xs, ws, cbias, lab)

    # nn.CrossEntropyLoss default reduction='mean' (glue, not the hot path).
    loss = jnp.mean(per_row[:B, 0])
    return loss, logits[:B, :C]


def _reference(x, W, label, m=0.35, s=30.0):
    # Pure-JAX reference mirroring the torch code, for a sanity check.
    x_n = x / jnp.clip(jnp.linalg.norm(x, axis=1, keepdims=True), 1e-12)
    w_n = W / jnp.clip(jnp.linalg.norm(W, axis=0, keepdims=True), 1e-12)
    costh = x_n @ w_n
    onehot = jax.nn.one_hot(label, W.shape[1], dtype=costh.dtype)
    logits = s * (costh - m * onehot)
    logp = jax.nn.log_softmax(logits, axis=1)
    loss = -jnp.mean(jnp.sum(onehot * logp, axis=1))
    return loss, logits


if __name__ == "__main__":
    m, s = 0.35, 30.0
    key = jax.random.PRNGKey(0)
    k1, k2, k3, k4, k5, k6 = jax.random.split(key, 6)

    # Case 1: the module's default-ish small shape (single tile, padded classes),
    # default precision="highest" (hi/lo bf16 split) -> tight parity with torch math.
    in_feats, n_classes, batch = 32, 10, 8
    x = jax.random.normal(k1, (batch, in_feats), dtype=jnp.float32)
    std = (2.0 / (in_feats + n_classes)) ** 0.5          # xavier_normal_(gain=1)
    W = std * jax.random.normal(k2, (in_feats, n_classes), dtype=jnp.float32)
    label = jax.random.randint(k3, (batch,), 0, n_classes, dtype=jnp.int32)

    loss, costh_m_s = amsoftmax_forward(x, W, label, m=m, s=s)
    jax.block_until_ready((loss, costh_m_s))
    ref_loss, ref_logits = _reference(x, W, label, m=m, s=s)
    assert jnp.allclose(loss, ref_loss, rtol=1e-3, atol=1e-3), (loss, ref_loss)
    assert jnp.allclose(costh_m_s, ref_logits, rtol=1e-3, atol=1e-3)

    # Case 2: multi-tile path (2 batch tiles x 2 class tiles, with class padding)
    # to validate the streaming logsumexp, masking bias, and target accumulation.
    in_feats2, n_classes2, batch2 = 64, 200, 16
    x2 = jax.random.normal(k4, (batch2, in_feats2), dtype=jnp.float32)
    std2 = (2.0 / (in_feats2 + n_classes2)) ** 0.5
    W2 = std2 * jax.random.normal(k5, (in_feats2, n_classes2), dtype=jnp.float32)
    label2 = jax.random.randint(k6, (batch2,), 0, n_classes2, dtype=jnp.int32)

    loss2, logits2 = amsoftmax_forward(x2, W2, label2, m=m, s=s, tb=8, tc=128)
    jax.block_until_ready((loss2, logits2))
    ref_loss2, ref_logits2 = _reference(x2, W2, label2, m=m, s=s)
    assert jnp.allclose(loss2, ref_loss2, rtol=1e-3, atol=1e-3), (loss2, ref_loss2)
    assert jnp.allclose(logits2, ref_logits2, rtol=1e-3, atol=1e-3)

    # Case 3: single-pass bf16 fast path (perf default per review); looser tolerance
    # because s=30 amplifies bf16 operand rounding (~0.05 absolute on logits).
    loss3, logits3 = amsoftmax_forward(x2, W2, label2, m=m, s=s, precision="bf16")
    jax.block_until_ready((loss3, logits3))
    assert jnp.allclose(loss3, ref_loss2, rtol=0.05, atol=0.25), (loss3, ref_loss2)
    assert jnp.allclose(logits3, ref_logits2, rtol=0.05, atol=0.25)

    print("KERNEL_OK")
</pallas_src>

<mosaic_0001>
module attributes {stable_mosaic.version = 11 : i64} {
  func.func @_amsoftmax_kernel(%arg0: i32, %arg1: i32, %arg2: memref<2x8x32xbf16, #tpu.memory_space<vmem>>, %arg3: memref<2x32x128xbf16, #tpu.memory_space<vmem>>, %arg4: memref<1x128xf32, #tpu.memory_space<vmem>>, %arg5: memref<8x1xi32, #tpu.memory_space<vmem>>, %arg6: memref<8x128xf32, #tpu.memory_space<vmem>>, %arg7: memref<8x1xf32, #tpu.memory_space<vmem>>, %arg8: memref<8x1xf32, #tpu.memory_space<vmem>>, %arg9: memref<8x1xf32, #tpu.memory_space<vmem>>) attributes {dimension_semantics = [#tpu.dimension_semantics<parallel>, #tpu.dimension_semantics<arbitrary>], iteration_bounds = array<i64: 1, 1>, scalar_prefetch = 0 : i64, scratch_operands = 2 : i64, tpu.core_type = #tpu.core_type<tc>, window_params = [{transform_indices = @transform_0, window_bounds = array<i64: 2, 8, 32>}, {transform_indices = @transform_1, window_bounds = array<i64: 2, 32, 128>}, {transform_indices = @transform_2, window_bounds = array<i64: 1, 128>}, {transform_indices = @transform_3, window_bounds = array<i64: 8, 1>}, {transform_indices = @transform_4, window_bounds = array<i64: 8, 128>}, {transform_indices = @transform_5, window_bounds = array<i64: 8, 1>}]} {
    %c0_i32 = arith.constant 0 : i32
    %0 = arith.cmpi eq, %arg1, %c0_i32 : i32
    %1 = arith.extui %0 : i1 to i32
    %c0_i32_0 = arith.constant 0 : i32
    %2 = arith.cmpi ne, %1, %c0_i32_0 : i32
    scf.if %2 {
      %cst_33 = arith.constant 0.000000e+00 : f32
      %50 = vector.broadcast %cst_33 : f32 to vector<8x1xf32>
      %c0_34 = arith.constant 0 : index
      %c0_35 = arith.constant 0 : index
      %51 = vector.load %arg8[%c0_34, %c0_35] : memref<8x1xf32, #tpu.memory_space<vmem>>, vector<8x1xf32>
      tpu.vector_store %arg8[%c0_34, %c0_35], %50 {strides = array<i32>} : memref<8x1xf32, #tpu.memory_space<vmem>>, vector<8x1xf32>,
      %cst_36 = arith.constant 0.000000e+00 : f32
      %52 = vector.broadcast %cst_36 : f32 to vector<8x1xf32>
      %c0_37 = arith.constant 0 : index
      %c0_38 = arith.constant 0 : index
      %53 = vector.load %arg9[%c0_37, %c0_38] : memref<8x1xf32, #tpu.memory_space<vmem>>, vector<8x1xf32>
      tpu.vector_store %arg9[%c0_37, %c0_38], %52 {strides = array<i32>} : memref<8x1xf32, #tpu.memory_space<vmem>>, vector<8x1xf32>,
    } else {
    }
    %c0 = arith.constant 0 : index
    %c0_1 = arith.constant 0 : index
    %c0_2 = arith.constant 0 : index
    %3 = vector.load %arg2[%c0, %c0_1, %c0_2] : memref<2x8x32xbf16, #tpu.memory_space<vmem>>, vector<1x8x32xbf16>
    %4 = vector.shape_cast %3 : vector<1x8x32xbf16> to vector<8x32xbf16>
    %c0_3 = arith.constant 0 : index
    %c0_4 = arith.constant 0 : index
    %c0_5 = arith.constant 0 : index
    %5 = vector.load %arg3[%c0_3, %c0_4, %c0_5] : memref<2x32x128xbf16, #tpu.memory_space<vmem>>, vector<1x32x128xbf16>
    %6 = vector.shape_cast %5 : vector<1x32x128xbf16> to vector<32x128xbf16>
    %cst = arith.constant dense<0.000000e+00> : vector<8x128xf32>
    %7 = tpu.matmul %4, %6, %cst {dimension_numbers = #tpu.dot_dimension_numbers<[1], [0], [0], [1], [0, 0, 1, 1], [], []>} : vector<8x32xbf16>, vector<32x128xbf16>, vector<8x128xf32> -> vector<8x128xf32>
    %c1 = arith.constant 1 : index
    %c0_6 = arith.constant 0 : index
    %c0_7 = arith.constant 0 : index
    %8 = vector.load %arg2[%c1, %c0_6, %c0_7] : memref<2x8x32xbf16, #tpu.memory_space<vmem>>, vector<1x8x32xbf16>
    %9 = vector.shape_cast %8 : vector<1x8x32xbf16> to vector<8x32xbf16>
    %c1_8 = arith.constant 1 : index
    %c0_9 = arith.constant 0 : index
    %c0_10 = arith.constant 0 : index
    %10 = vector.load %arg3[%c1_8, %c0_9, %c0_10] : memref<2x32x128xbf16, #tpu.memory_space<vmem>>, vector<1x32x128xbf16>
    %11 = vector.shape_cast %10 : vector<1x32x128xbf16> to vector<32x128xbf16>
    %cst_11 = arith.constant dense<0.000000e+00> : vector<8x128xf32>
    %12 = tpu.matmul %4, %11, %cst_11 {dimension_numbers = #tpu.dot_dimension_numbers<[1], [0], [0], [1], [0, 0, 1, 1], [], []>} : vector<8x32xbf16>, vector<32x128xbf16>, vector<8x128xf32> -> vector<8x128xf32>
    %cst_12 = arith.constant dense<0.000000e+00> : vector<8x128xf32>
    %13 = tpu.matmul %9, %6, %cst_12 {dimension_numbers = #tpu.dot_dimension_numbers<[1], [0], [0], [1], [0, 0, 1, 1], [], []>} : vector<8x32xbf16>, vector<32x128xbf16>, vector<8x128xf32> -> vector<8x128xf32>
    %14 = arith.addf %12, %13 : vector<8x128xf32>
    %15 = arith.addf %7, %14 : vector<8x128xf32>
    %16 = tpu.iota {dimensions = array<i32: 1>} : vector<1x128xi32>
    %c128_i32 = arith.constant 128 : i32
    %17 = arith.muli %arg1, %c128_i32 : i32
    %18 = vector.broadcast %17 : i32 to vector<1x128xi32>
    %19 = arith.addi %16, %18 : vector<1x128xi32>
    %c0_13 = arith.constant 0 : index
    %c0_14 = arith.constant 0 : index
    %20 = vector.load %arg5[%c0_13, %c0_14] : memref<8x1xi32, #tpu.memory_space<vmem>>, vector<8x1xi32>
    %21 = vector.broadcast %19 : vector<1x128xi32> to vector<8x128xi32>
    %22 = vector.broadcast %20 : vector<8x1xi32> to vector<8x128xi32>
    %23 = arith.cmpi eq, %21, %22 : vector<8x128xi32>
    %24 = arith.extui %23 : vector<8x128xi1> to vector<8x128xi32>
    %25 = arith.sitofp %24 : vector<8x128xi32> to vector<8x128xf32>
    %cst_15 = arith.constant 1.050000e+01 : f32
    %26 = vector.broadcast %cst_15 : f32 to vector<8x128xf32>
    %27 = arith.mulf %26, %25 : vector<8x128xf32>
    %28 = arith.subf %15, %27 : vector<8x128xf32>
    %c0_16 = arith.constant 0 : index
    %c0_17 = arith.constant 0 : index
    %29 = vector.load %arg4[%c0_16, %c0_17] : memref<1x128xf32, #tpu.memory_space<vmem>>, vector<1x128xf32>
    %30 = vector.broadcast %29 : vector<1x128xf32> to vector<8x128xf32>
    %31 = arith.addf %28, %30 : vector<8x128xf32>
    %c0_18 = arith.constant 0 : index
    %c0_19 = arith.constant 0 : index
    %32 = vector.load %arg6[%c0_18, %c0_19] : memref<8x128xf32, #tpu.memory_space<vmem>>, vector<8x128xf32>
    tpu.vector_store %arg6[%c0_18, %c0_19], %31 {strides = array<i32>} : memref<8x128xf32, #tpu.memory_space<vmem>>, vector<8x128xf32>,
    %c0_20 = arith.constant 0 : index
    %c0_21 = arith.constant 0 : index
    %33 = vector.load %arg8[%c0_20, %c0_21] : memref<8x1xf32, #tpu.memory_space<vmem>>, vector<8x1xf32>
    %cst_22 = arith.constant 3.000000e+01 : f32
    %34 = vector.broadcast %cst_22 : f32 to vector<8x128xf32>
    %35 = arith.subf %31, %34 : vector<8x128xf32>
    %36 = math.exp %35 : vector<8x128xf32>
    %cst_23 = arith.constant dense<0.000000e+00> : vector<8xf32>
    %37 = vector.multi_reduction <add>, %36, %cst_23 [1] : vector<8x128xf32> to vector<8xf32>
    %38 = vector.shape_cast %37 : vector<8xf32> to vector<8x1xf32>
    %39 = arith.addf %33, %38 : vector<8x1xf32>
    %c0_24 = arith.constant 0 : index
    %c0_25 = arith.constant 0 : index
    %40 = vector.load %arg8[%c0_24, %c0_25] : memref<8x1xf32, #tpu.memory_space<vmem>>, vector<8x1xf32>
    tpu.vector_store %arg8[%c0_24, %c0_25], %39 {strides = array<i32>} : memref<8x1xf32, #tpu.memory_space<vmem>>, vector<8x1xf32>,
    %c0_26 = arith.constant 0 : index
    %c0_27 = arith.constant 0 : index
    %41 = vector.load %arg9[%c0_26, %c0_27] : memref<8x1xf32, #tpu.memory_space<vmem>>, vector<8x1xf32>
    %42 = arith.mulf %31, %25 : vector<8x128xf32>
    %cst_28 = arith.constant dense<0.000000e+00> : vector<8xf32>
    %43 = vector.multi_reduction <add>, %42, %cst_28 [1] : vector<8x128xf32> to vector<8xf32>
    %44 = vector.shape_cast %43 : vector<8xf32> to vector<8x1xf32>
    %45 = arith.addf %41, %44 : vector<8x1xf32>
    %c0_29 = arith.constant 0 : index
    %c0_30 = arith.constant 0 : index
    %46 = vector.load %arg9[%c0_29, %c0_30] : memref<8x1xf32, #tpu.memory_space<vmem>>, vector<8x1xf32>
    tpu.vector_store %arg9[%c0_29, %c0_30], %45 {strides = array<i32>} : memref<8x1xf32, #tpu.memory_space<vmem>>, vector<8x1xf32>,
    %c0_i32_31 = arith.constant 0 : i32
    %47 = arith.cmpi eq, %arg1, %c0_i32_31 : i32
    %48 = arith.extui %47 : i1 to i32
    %c0_i32_32 = arith.constant 0 : i32
    %49 = arith.cmpi ne, %48, %c0_i32_32 : i32
    scf.if %49 {
      %c0_33 = arith.constant 0 : index
      %c0_34 = arith.constant 0 : index
      %50 = vector.load %arg8[%c0_33, %c0_34] : memref<8x1xf32, #tpu.memory_space<vmem>>, vector<8x1xf32>
      %51 = math.log %50 : vector<8x1xf32>
      %cst_35 = arith.constant 3.000000e+01 : f32
      %52 = vector.broadcast %cst_35 : f32 to vector<8x1xf32>
      %53 = arith.addf %52, %51 : vector<8x1xf32>
      %c0_36 = arith.constant 0 : index
      %c0_37 = arith.constant 0 : index
      %54 = vector.load %arg9[%c0_36, %c0_37] : memref<8x1xf32, #tpu.memory_space<vmem>>, vector<8x1xf32>
      %55 = arith.subf %53, %54 : vector<8x1xf32>
      %c0_38 = arith.constant 0 : index
      %c0_39 = arith.constant 0 : index
      %56 = vector.load %arg7[%c0_38, %c0_39] : memref<8x1xf32, #tpu.memory_space<vmem>>, vector<8x1xf32>
      tpu.vector_store %arg7[%c0_38, %c0_39], %55 {strides = array<i32>} : memref<8x1xf32, #tpu.memory_space<vmem>>, vector<8x1xf32>,
    } else {
    }
    return
  }
  func.func @transform_0(%arg0: i32, %arg1: i32) -> (i32, i32, i32) {
    %c0_i32 = arith.constant 0 : i32
    %c0_i32_0 = arith.constant 0 : i32
    %c0_i32_1 = arith.constant 0 : i32
    return %c0_i32, %arg0, %c0_i32_0 : i32, i32, i32
  }
  func.func @transform_1(%arg0: i32, %arg1: i32) -> (i32, i32, i32) {
    %c0_i32 = arith.constant 0 : i32
    %c0_i32_0 = arith.constant 0 : i32
    %c0_i32_1 = arith.constant 0 : i32
    return %c0_i32, %c0_i32_0, %arg1 : i32, i32, i32
  }
  func.func @transform_2(%arg0: i32, %arg1: i32) -> (i32, i32) {
    %c0_i32 = arith.constant 0 : i32
    %c0_i32_0 = arith.constant 0 : i32
    return %c0_i32, %arg1 : i32, i32
  }
  func.func @transform_3(%arg0: i32, %arg1: i32) -> (i32, i32) {
    %c0_i32 = arith.constant 0 : i32
    %c0_i32_0 = arith.constant 0 : i32
    return %arg0, %c0_i32 : i32, i32
  }
  func.func @transform_4(%arg0: i32, %arg1: i32) -> (i32, i32) {
    %c0_i32 = arith.constant 0 : i32
    return %arg0, %arg1 : i32, i32
  }
  func.func @transform_5(%arg0: i32, %arg1: i32) -> (i32, i32) {
    %c0_i32 = arith.constant 0 : i32
    %c0_i32_0 = arith.constant 0 : i32
    return %arg0, %c0_i32 : i32, i32
  }
}

</mosaic_0001>

<llo_original>
// kernel: tpu_custom_call.1
$region0: #{tpu_custom_call.1}
  #allocation0 [shape = 'u32[]', space=smem, size = 0x4, offset = 0x4, fixed_abs, tag = 'smem constant byte address 0x4 - core index']
  #allocation1 [shape = 'u32[144,128]{1,0:T(1,128)}', space=vmem, size = 0x12000, scoped, tag = 'internal scratch']
  #allocation2 [shape = 'f32[8,1]{1,0:T(8,128)}', space=vmem, size = 0x1000, scoped, tag = 'scratch operand']
  #allocation3 [shape = 'f32[8,1]{1,0:T(8,128)}', space=vmem, size = 0x1000, scoped, tag = 'scratch operand']
  %s0 = inlined_call_operand.vmem [shape: bf16[2,8,32], index: 0, kind: input, shape index: {}]
  %s1 = inlined_call_operand.hbm [shape: bf16[2,32,128], index: 1, kind: input, shape index: {}]
  %s2 = inlined_call_operand.vmem [shape: f32[1,128], index: 2, kind: input, shape index: {}]
  %s3 = inlined_call_operand.vmem [shape: s32[8,1], index: 3, kind: input, shape index: {}]
  %s4 = inlined_call_operand.hbm [shape: f32[8,128], index: 4, kind: output, shape index: {0}]
  %s5 = inlined_call_operand.vmem [shape: f32[8,1], index: 5, kind: output, shape index: {1}]
  %6 = xla_tuple %s4, %s5
  %s7 = sld [smem:[#allocation0]]
  $region46: #{tpu_custom_call.1} parent=0
    _
  %s9 = ssub.s32 1, %s7
  %s10 = scalar_select 0, %s9, %s7
  $region1: #{tpu_custom_call.1} parent=0
    #allocation4 [shape = 'u8[16384]{0}', space=vmem, size = 0x4000, scoped, tag = 'input window, operand 1, single buffered']
    #allocation5 [shape = 's32[1]{0}', space=sflag, size = 0x4, scoped, tag = 'scoped memory for tpu_custom_call.1']
    #allocation6 [shape = 's32[1]{0}', space=sflag, size = 0x4, scoped, tag = 'scoped memory for tpu_custom_call.1']
    #allocation7 [shape = 'u8[4096]{0}', space=vmem, size = 0x1000, scoped, tag = 'output window, operand 0, single buffered']
    %11 = vsyncpa [#allocation5], 0
    %12 = vsyncpa [#allocation6], 0
    // Predicated region
    $region2: #{tpu_custom_call.1} parent=1 // pred_check
      _
    $region3: #{tpu_custom_call.1} parent=1 // pred_check_branch
      %14 = sbr.rel (0) target = $region5
    $region4: #{tpu_custom_call.1} parent=1 // pred_region
      _
    $region5: #{tpu_custom_call.1} parent=1 // pred_fallthru
      _
    // Predicated region
    $region6: #{tpu_custom_call.1} parent=1 // pred_check
      _
    $region7: #{tpu_custom_call.1} parent=1 // pred_check_branch
      %16 = sbr.rel (0) target = $region9
    $region8: #{tpu_custom_call.1} parent=1 // pred_region
      %s18 = ssub.s32 512, 512
      %19 = vsyncadd [#allocation5], %s18
      %s20 = sshll.u32 [#allocation4], 4
      %s21 = int_to_ptr.vmem [resolvable:$true] %s20
      %26 = dma.hbm_to_vmem [thread:$0]  %s1, 512, %s21, [#allocation5], 64, 64, 4
    $region9: #{tpu_custom_call.1} parent=1 // pred_fallthru
      _
    // Predicated region
    $region10: #{tpu_custom_call.1} parent=1 // pred_check
      _
    $region11: #{tpu_custom_call.1} parent=1 // pred_check_branch
      %28 = sbr.rel (0) target = $region13
    $region12: #{tpu_custom_call.1} parent=1 // pred_region
      _
    $region13: #{tpu_custom_call.1} parent=1 // pred_fallthru
      _
    // Predicated region
    $region14: #{tpu_custom_call.1} parent=1 // pred_check
      _
    $region15: #{tpu_custom_call.1} parent=1 // pred_check_branch
      %30 = sbr.rel (0) target = $region17
    $region16: #{tpu_custom_call.1} parent=1 // pred_region
      _
    $region17: #{tpu_custom_call.1} parent=1 // pred_fallthru
      _
    // Predicated region
    $region18: #{tpu_custom_call.1} parent=1 // pred_check
      _
    $region19: #{tpu_custom_call.1} parent=1 // pred_check_branch
      %32 = sbr.rel (0) target = $region21
    $region20: #{tpu_custom_call.1} parent=1 // pred_region
      %33 = dma.done [#allocation5], 512
    $region21: #{tpu_custom_call.1} parent=1 // pred_fallthru
      _
    %p35 = scmp.eq.s32.totalorder 0, 0
    // Predicated region
    $region22: #{tpu_custom_call.1} parent=1 // pred_check
      %p36 = pneg %p35
    $region23: #{tpu_custom_call.1} parent=1 // pred_check_branch
      %38 = sbr.rel (%p36) target = $region25
    $region24: #{tpu_custom_call.1} parent=1 // pred_region
      %vm39 = vcmask 7168
      %40 = vst.msk [vmem:[#allocation2] sm:$0xff] %vm39, 0.0
      %41 = vst.msk [vmem:[#allocation3] sm:$0xff] %vm39, 0.0
    $region25: #{tpu_custom_call.1} parent=1 // pred_fallthru
      _
    %v42 = vld [vmem:[%s0] sm:$0xf]
    %v43 = vld [vmem:[#allocation4] sm:$0xf]
    %v44 = vld [vmem:[#allocation4 + $0x4] sm:$0xf]
    %v45 = vld [vmem:[#allocation4 + $0x8] sm:$0xf]
    %v46 = vld [vmem:[#allocation4 + $0xc] sm:$0xf]
    %s47 = scalar_lea.vmem %s0, 4
    %v48 = vld [vmem:[%s47] sm:$0xf]
    %s49 = scalar_lea.vmem [#allocation4], 16
    %v50 = vld [vmem:[%s49] sm:$0xf]
    %v51 = vld [vmem:[%s49 + $0x4] sm:$0xf]
    %v52 = vld [vmem:[%s49 + $0x8] sm:$0xf]
    %v53 = vld [vmem:[%s49 + $0xc] sm:$0xf]
    %v58 = vunpack.c.l.b16 %v43
    %v59 = vunpack.c.l.b16 %v44
    %v60 = vunpack.c.l.b16 %v45
    %v61 = vunpack.c.l.b16 %v46
    %v62 = vpack.c.b16 %v59, %v58
    %v63 = vpack.c.b16 %v61, %v60
    %vm66 = vcmask 261120
    %v68 = vsel %vm66, %v48, 0
    %70 = vmatprep.subr.bf16.mxu0 0
    %71 = vmatpush1.bf16.msra.mxu0 %v62
    %72 = vmatprep.subr.bf16.mxu0 0
    %73 = vmatpush1.bf16.msra.mxu0 %v63
    %74 = vmatprep.subr.bf16.mxu0 0
    %75 = vmatpush1.bf16.msra.mxu0 0
    %76 = vmatprep.subr.bf16.mxu0 0
    %77 = vmatpush1.bf16.msra.mxu0 0
    %78 = vmatprep.subr.bf16.mxu0 0
    %79 = vmatpush1.bf16.msra.mxu0 0
    %80 = vmatprep.subr.bf16.mxu0 0
    %81 = vmatpush1.bf16.msra.mxu0 0
    %82 = vmatprep.subr.bf16.mxu0 0
    %83 = vmatpush1.bf16.msra.mxu0 0
    %84 = vmatprep.subr.bf16.mxu0 0
    %85 = vmatpush1.bf16.msra.mxu0 0
    %86 = vmatprep.subr.bf16.mxu0 0
    %87 = vmatpush1.bf16.msra.mxu0 0
    %88 = vmatprep.subr.bf16.mxu0 0
    %89 = vmatpush1.bf16.msra.mxu0 0
    %90 = vmatprep.subr.bf16.mxu0 0
    %91 = vmatpush1.bf16.msra.mxu0 0
    %92 = vmatprep.subr.bf16.mxu0 0
    %93 = vmatpush1.bf16.msra.mxu0 0
    %94 = vmatprep.subr.bf16.mxu0 0
    %95 = vmatpush1.bf16.msra.mxu0 0
    %96 = vmatprep.subr.bf16.mxu0 0
    %97 = vmatpush1.bf16.msra.mxu0 0
    %98 = vmatprep.subr.bf16.mxu0 0
    %99 = vmatpush1.bf16.msra.mxu0 0
    %100 = vmatprep.subr.bf16.mxu0 0
    %101 = vmatpush1.bf16.msra.mxu0 0
    %102 = vmatprep.mubr.bf16.mxu0 0
    %103 = vmatmul.mubr.bf16.gmra.mrb[0].mxu0 %v68
    %v104 = vpop.f32.mrb[0].mxu0
    %v105 = vadd.f32 0.0, %v104
    %v106 = vpop.f32.mrb[0].mxu0
    %v107 = vpop.f32.mrb[0].mxu0
    %v108 = vpop.f32.mrb[0].mxu0
    %109 = vdwg.mxu0
    %v114 = vunpack.c.l.b16 %v50
    %v115 = vunpack.c.l.b16 %v51
    %v116 = vunpack.c.l.b16 %v52
    %v117 = vunpack.c.l.b16 %v53
    %v118 = vpack.c.b16 %v115, %v114
    %v119 = vpack.c.b16 %v117, %v116
    %v123 = vsel %vm66, %v42, 0
    %125 = vmatprep.subr.bf16.mxu0 0
    %126 = vmatpush1.bf16.msra.mxu0 %v118
    %127 = vmatprep.subr.bf16.mxu0 0
    %128 = vmatpush1.bf16.msra.mxu0 %v119
    %129 = vmatprep.subr.bf16.mxu0 0
    %130 = vmatpush1.bf16.msra.mxu0 0
    %131 = vmatprep.subr.bf16.mxu0 0
    %132 = vmatpush1.bf16.msra.mxu0 0
    %133 = vmatprep.subr.bf16.mxu0 0
    %134 = vmatpush1.bf16.msra.mxu0 0
    %135 = vmatprep.subr.bf16.mxu0 0
    %136 = vmatpush1.bf16.msra.mxu0 0
    %137 = vmatprep.subr.bf16.mxu0 0
    %138 = vmatpush1.bf16.msra.mxu0 0
    %139 = vmatprep.subr.bf16.mxu0 0
    %140 = vmatpush1.bf16.msra.mxu0 0
    %141 = vmatprep.subr.bf16.mxu0 0
    %142 = vmatpush1.bf16.msra.mxu0 0
    %143 = vmatprep.subr.bf16.mxu0 0
    %144 = vmatpush1.bf16.msra.mxu0 0
    %145 = vmatprep.subr.bf16.mxu0 0
    %146 = vmatpush1.bf16.msra.mxu0 0
    %147 = vmatprep.subr.bf16.mxu0 0
    %148 = vmatpush1.bf16.msra.mxu0 0
    %149 = vmatprep.subr.bf16.mxu0 0
    %150 = vmatpush1.bf16.msra.mxu0 0
    %151 = vmatprep.subr.bf16.mxu0 0
    %152 = vmatpush1.bf16.msra.mxu0 0
    %153 = vmatprep.subr.bf16.mxu0 0
    %154 = vmatpush1.bf16.msra.mxu0 0
    %155 = vmatprep.subr.bf16.mxu0 0
    %156 = vmatpush1.bf16.msra.mxu0 0
    %157 = vmatprep.mubr.bf16.mxu0 0
    %158 = vmatmul.mubr.bf16.gmra.mrb[0].mxu0 %v123
    %v159 = vpop.f32.mrb[0].mxu0
    %v160 = vadd.f32 %v105, %v159
    %v161 = vpop.f32.mrb[0].mxu0
    %v162 = vpop.f32.mrb[0].mxu0
    %v163 = vpop.f32.mrb[0].mxu0
    %164 = vdwg.mxu0
    %165 = vmatprep.subr.bf16.mxu0 0
    %166 = vmatpush1.bf16.msra.mxu0 %v62
    %167 = vmatprep.subr.bf16.mxu0 0
    %168 = vmatpush1.bf16.msra.mxu0 %v63
    %169 = vmatprep.subr.bf16.mxu0 0
    %170 = vmatpush1.bf16.msra.mxu0 0
    %171 = vmatprep.subr.bf16.mxu0 0
    %172 = vmatpush1.bf16.msra.mxu0 0
    %173 = vmatprep.subr.bf16.mxu0 0
    %174 = vmatpush1.bf16.msra.mxu0 0
    %175 = vmatprep.subr.bf16.mxu0 0
    %176 = vmatpush1.bf16.msra.mxu0 0
    %177 = vmatprep.subr.bf16.mxu0 0
    %178 = vmatpush1.bf16.msra.mxu0 0
    %179 = vmatprep.subr.bf16.mxu0 0
    %180 = vmatpush1.bf16.msra.mxu0 0
    %181 = vmatprep.subr.bf16.mxu0 0
    %182 = vmatpush1.bf16.msra.mxu0 0
    %183 = vmatprep.subr.bf16.mxu0 0
    %184 = vmatpush1.bf16.msra.mxu0 0
    %185 = vmatprep.subr.bf16.mxu0 0
    %186 = vmatpush1.bf16.msra.mxu0 0
    %187 = vmatprep.subr.bf16.mxu0 0
    %188 = vmatpush1.bf16.msra.mxu0 0
    %189 = vmatprep.subr.bf16.mxu0 0
    %190 = vmatpush1.bf16.msra.mxu0 0
    %191 = vmatprep.subr.bf16.mxu0 0
    %192 = vmatpush1.bf16.msra.mxu0 0
    %193 = vmatprep.subr.bf16.mxu0 0
    %194 = vmatpush1.bf16.msra.mxu0 0
    %195 = vmatprep.subr.bf16.mxu0 0
    %196 = vmatpush1.bf16.msra.mxu0 0
    %197 = vmatprep.mubr.bf16.mxu0 0
    %198 = vmatmul.mubr.bf16.gmra.mrb[0].mxu0 %v123
    %v199 = vpop.f32.mrb[0].mxu0
    %v200 = vadd.f32 %v160, %v199
    %v201 = vpop.f32.mrb[0].mxu0
    %v202 = vpop.f32.mrb[0].mxu0
    %v203 = vpop.f32.mrb[0].mxu0
    %204 = vdwg.mxu0
    %v205 = vlaneseq
    %v206 = vand.u32 %v205, 127
    %s207 = smul.u32 0, 128
    %v208 = vstv %s207
    %v209 = vadd.s32 %v206, %v208
    %v210 = vld [vmem:[%s3] sm:$0xff]
    %211 = vset.pattern.permute.xlu0 0
    %212 = vperm.xlu0 %211, %v210
    %v213 = vpop.permute.xlu0 %212
    %vm214 = vcmp.eq.s32.totalorder %v209, %v213
    %v215 = vsel %vm214, 1, 0
    %v216 = vcvt.s32.f32 %v215
    %v217 = vmul.f32 %v216, 10.5
    %v218 = vsub.f32 %v200, %v217
    %v219 = vld [vmem:[%s2] sm:$0x1]
    %v221 = vlaneseq
    %v222 = vshrl.u32 %v221, 7
    %v223 = vsub.s32 0, %v222
    %v224 = vrot.slane %v219, %v223
    %v226 = vadd.f32 %v218, %v224
    %227 = vst [vmem:[#allocation7] sm:$0xff] %v226
    %v228 = vld [vmem:[#allocation2] sm:$0xff]
    %v229 = vsub.f32 %v226, 30.0
    %v230 = vmul.f32 %v229, 1.442695
    %v231 = vpow.pop %v230
    %232 = vadd.xlane.f32.xlu0 %v231
    %v233 = vpop.xlane.xlu0 %232
    %v234 = vadd.f32 %v228, %v233
    %vm235 = vcmask 7168
    %236 = vst.msk [vmem:[#allocation2] sm:$0xff] %vm235, %v234
    %v237 = vld [vmem:[#allocation3] sm:$0xff]
    %v238 = vmul.f32 %v226, %v216
    %239 = vadd.xlane.f32.xlu0 %v238
    %v240 = vpop.xlane.xlu0 %239
    %v241 = vadd.f32 %v237, %v240
    %242 = vst.msk [vmem:[#allocation3] sm:$0xff] %vm235, %v241
    // Predicated region
    $region26: #{tpu_custom_call.1} parent=1 // pred_check
      %p243 = pneg %p35
    $region27: #{tpu_custom_call.1} parent=1 // pred_check_branch
      %245 = sbr.rel (%p243) target = $region29
    $region28: #{tpu_custom_call.1} parent=1 // pred_region
      %v246 = vld [vmem:[#allocation2] sm:$0xff]
      %v247 = vlog2.pop %v246
      %v248 = vmul.f32 %v247, 0.6931472
      %v249 = vadd.f32 %v248, 30.0
      %v250 = vld [vmem:[#allocation3] sm:$0xff]
      %v251 = vsub.f32 %v249, %v250
      %252 = vst.msk [vmem:[%s5] sm:$0xff] %vm235, %v251
    $region29: #{tpu_custom_call.1} parent=1 // pred_fallthru
      _
    // Predicated region
    $region30: #{tpu_custom_call.1} parent=1 // pred_check
      _
    $region31: #{tpu_custom_call.1} parent=1 // pred_check_branch
      %254 = sbr.rel (0) target = $region33
    $region32: #{tpu_custom_call.1} parent=1 // pred_region
      %s256 = ssub.s32 128, 128
      %257 = vsyncadd [#allocation6], %s256
      %s259 = sshll.u32 [#allocation7], 4
      %s260 = int_to_ptr.vmem [resolvable:$true] %s259
      %262 = dma.vmem_to_hbm [thread:$0]  %s260, 128, %s4, [#allocation6]
    $region33: #{tpu_custom_call.1} parent=1 // pred_fallthru
      _
    // Predicated region
    $region34: #{tpu_custom_call.1} parent=1 // pred_check
      _
    $region35: #{tpu_custom_call.1} parent=1 // pred_check_branch
      %264 = sbr.rel (0) target = $region37
    $region36: #{tpu_custom_call.1} parent=1 // pred_region
      _
    $region37: #{tpu_custom_call.1} parent=1 // pred_fallthru
      _
    // Predicated region
    $region38: #{tpu_custom_call.1} parent=1 // pred_check
      _
    $region39: #{tpu_custom_call.1} parent=1 // pred_check_branch
      %266 = sbr.rel (0) target = $region41
    $region40: #{tpu_custom_call.1} parent=1 // pred_region
      %267 = dma.done [#allocation6], 128
    $region41: #{tpu_custom_call.1} parent=1 // pred_fallthru
      _
    // Predicated region
    $region42: #{tpu_custom_call.1} parent=1 // pred_check
      _
    $region43: #{tpu_custom_call.1} parent=1 // pred_check_branch
      %269 = sbr.rel (0) target = $region45
    $region44: #{tpu_custom_call.1} parent=1 // pred_region
      _
    $region45: #{tpu_custom_call.1} parent=1 // pred_fallthru
      _
    %270 = vsyncpa [#allocation5], 1
    %271 = vsyncpa [#allocation6], 1

</llo_original>
